<compile_context>
chip_gen: v5e
topology: v5e:2x2
jax: 0.10.0
libtpu: 0.0.40
codegen_flags: <defaults>
</compile_context>

<pallas_src>
import jax
import jax.numpy as jnp
from jax.experimental import pallas as pl
from jax.experimental.pallas import tpu as pltpu


def coordatt_kernel(x_ref, w1_ref, b1_ref, wh_ref, bh_ref, ww_ref, bw_ref, o_ref):
    # x_ref : (1, C, H, W)  one batch element, native NCHW layout
    # w1_ref: (mip, C)      conv1 weight with BN scale folded in
    # b1_ref: (mip, 1)      conv1 bias with BN shift folded in
    # wh_ref: (C, mip), bh_ref: (C, 1)   conv_h weight / bias
    # ww_ref: (C, mip), bw_ref: (C, 1)   conv_w weight / bias
    x = x_ref[0].astype(jnp.float32)                      # (C, H, W)

    # Directional average pools (single read of x, both reductions).
    p_h = jnp.mean(x, axis=2)                             # (C, H)  pool over W (lane axis)
    p_w = jnp.mean(x, axis=1)                             # (C, W)  pool over H (sublane axis)

    w1 = w1_ref[...]                                      # (mip, C)
    b1 = b1_ref[...]                                      # (mip, 1)

    def shared_mlp(p):
        # conv1 (1x1, BN folded) + h_swish.  Applied per spatial position, so
        # running each pooled branch separately == concat -> conv -> split.
        y = jnp.dot(w1, p, preferred_element_type=jnp.float32) + b1
        return y * jnp.clip(y + 3.0, 0.0, 6.0) * (1.0 / 6.0)   # h_swish

    y_h = shared_mlp(p_h)                                 # (mip, H)
    y_w = shared_mlp(p_w)                                 # (mip, W)

    a_h = jax.nn.sigmoid(
        jnp.dot(wh_ref[...], y_h, preferred_element_type=jnp.float32) + bh_ref[...])  # (C, H)
    a_w = jax.nn.sigmoid(
        jnp.dot(ww_ref[...], y_w, preferred_element_type=jnp.float32) + bw_ref[...])  # (C, W)

    # Gated output: broadcast a_h over W (lanes) and a_w over H (sublanes).
    o_ref[0] = (x * a_h[:, :, None] * a_w[:, None, :]).astype(o_ref.dtype)


def coordatt_forward(x, w1, b1, bn_gamma, bn_beta, bn_mean, bn_var,
                     wh, bh, ww, bw, *, eps=1e-5):
    """x: (B, C, H, W) NCHW.  Weights are the squeezed 1x1-conv kernels:
    w1: (mip, C), wh/ww: (oup, mip); biases 1-D.  BN params are per-mip-channel
    inference-mode running stats / affine."""
    B, C, H, W = x.shape
    mip = w1.shape[0]
    oup = wh.shape[0]
    assert oup == C, "CoordAtt gates must match input channels for the residual multiply"

    # Fold inference-mode BatchNorm into conv1 (scalar-sized glue, no HBM traffic).
    bn_scale = bn_gamma / jnp.sqrt(bn_var + eps)                    # (mip,)
    w1_f = (w1 * bn_scale[:, None]).astype(jnp.float32)             # (mip, C)
    b1_f = (b1 * bn_scale + bn_beta - bn_mean * bn_scale)           # (mip,)
    b1_f = b1_f.astype(jnp.float32).reshape(mip, 1)
    wh_f = wh.astype(jnp.float32)
    ww_f = ww.astype(jnp.float32)
    bh_2d = bh.astype(jnp.float32).reshape(oup, 1)
    bw_2d = bw.astype(jnp.float32).reshape(oup, 1)

    # TODO(synk): for large C*H*W the (1, C, H, W) block should be tiled over the
    # spatial axes with a two-pass scheme (accumulate running sums for both pools
    # on an "arbitrary" grid axis, then a second apply pass) to stay inside v7x's
    # 64 MiB VMEM; unnecessary at these sizes.
    return pl.pallas_call(
        coordatt_kernel,
        out_shape=jax.ShapeDtypeStruct((B, C, H, W), x.dtype),
        grid_spec=pltpu.PrefetchScalarGridSpec(
            num_scalar_prefetch=0,
            grid=(B,),
            in_specs=[
                pl.BlockSpec((1, C, H, W), lambda b: (b, 0, 0, 0)),
                pl.BlockSpec((mip, C), lambda b: (0, 0)),
                pl.BlockSpec((mip, 1), lambda b: (0, 0)),
                pl.BlockSpec((oup, mip), lambda b: (0, 0)),
                pl.BlockSpec((oup, 1), lambda b: (0, 0)),
                pl.BlockSpec((oup, mip), lambda b: (0, 0)),
                pl.BlockSpec((oup, 1), lambda b: (0, 0)),
            ],
            out_specs=pl.BlockSpec((1, C, H, W), lambda b: (b, 0, 0, 0)),
        ),
        compiler_params=pltpu.CompilerParams(
            dimension_semantics=("parallel",)),
    )(x, w1_f, b1_f, wh_f, bh_2d, ww_f, bw_2d)


def coordatt_reference(x, w1, b1, bn_gamma, bn_beta, bn_mean, bn_var,
                       wh, bh, ww, bw, *, eps=1e-5):
    """Pure-JAX reference matching the PyTorch CoordAtt.forward (eval-mode BN)."""
    B, C, H, W = x.shape
    x_h = jnp.mean(x, axis=3)                              # (B, C, H)   pool over W
    x_w = jnp.mean(x, axis=2)                              # (B, C, W)   pool over H
    y = jnp.concatenate([x_h, x_w], axis=2)                # (B, C, H+W)
    y = jnp.einsum('mc,bcl->bml', w1, y) + b1[None, :, None]
    y = (y - bn_mean[None, :, None]) / jnp.sqrt(bn_var[None, :, None] + eps)
    y = y * bn_gamma[None, :, None] + bn_beta[None, :, None]
    y = y * jnp.clip(y + 3.0, 0.0, 6.0) / 6.0              # h_swish
    y_h, y_w = y[:, :, :H], y[:, :, H:]
    a_h = jax.nn.sigmoid(jnp.einsum('om,bml->bol', wh, y_h) + bh[None, :, None])  # (B,C,H)
    a_w = jax.nn.sigmoid(jnp.einsum('om,bml->bol', ww, y_w) + bw[None, :, None])  # (B,C,W)
    return x * a_h[:, :, :, None] * a_w[:, :, None, :]


if __name__ == "__main__":
    key = jax.random.PRNGKey(0)
    ks = jax.random.split(key, 12)

    # CoordAtt(inp=4, oup=4, reduction=32): mip = max(8, 4 // 32) = 8
    B, C, H, W = 2, 4, 16, 16
    reduction = 32
    mip = max(8, C // reduction)

    x = jax.random.normal(ks[0], (B, C, H, W), dtype=jnp.float32)

    w1 = 0.1 * jax.random.normal(ks[1], (mip, C), dtype=jnp.float32)     # conv1.weight[:, :, 0, 0]
    b1 = 0.1 * jax.random.normal(ks[2], (mip,), dtype=jnp.float32)       # conv1.bias
    bn_gamma = 1.0 + 0.1 * jax.random.normal(ks[3], (mip,), dtype=jnp.float32)
    bn_beta = 0.1 * jax.random.normal(ks[4], (mip,), dtype=jnp.float32)
    bn_mean = 0.1 * jax.random.normal(ks[5], (mip,), dtype=jnp.float32)
    bn_var = 1.0 + 0.1 * jax.random.uniform(ks[6], (mip,), dtype=jnp.float32)
    wh = 0.1 * jax.random.normal(ks[7], (C, mip), dtype=jnp.float32)     # conv_h.weight[:, :, 0, 0]
    bh = 0.1 * jax.random.normal(ks[8], (C,), dtype=jnp.float32)
    ww = 0.1 * jax.random.normal(ks[9], (C, mip), dtype=jnp.float32)     # conv_w.weight[:, :, 0, 0]
    bw = 0.1 * jax.random.normal(ks[10], (C,), dtype=jnp.float32)

    out = coordatt_forward(x, w1, b1, bn_gamma, bn_beta, bn_mean, bn_var, wh, bh, ww, bw)
    jax.block_until_ready(out)

    ref = coordatt_reference(x, w1, b1, bn_gamma, bn_beta, bn_mean, bn_var, wh, bh, ww, bw)
    assert out.shape == (B, C, H, W)
    assert jnp.allclose(out, ref, atol=1e-5, rtol=1e-5), "mismatch vs reference"

    print("KERNEL_OK")
</pallas_src>

<mosaic_0001>
module attributes {stable_mosaic.version = 11 : i64} {
  func.func @coordatt_kernel(%arg0: i32, %arg1: memref<1x4x16x16xf32, #tpu.memory_space<vmem>>, %arg2: memref<8x4xf32, #tpu.memory_space<vmem>>, %arg3: memref<8x1xf32, #tpu.memory_space<vmem>>, %arg4: memref<4x8xf32, #tpu.memory_space<vmem>>, %arg5: memref<4x1xf32, #tpu.memory_space<vmem>>, %arg6: memref<4x8xf32, #tpu.memory_space<vmem>>, %arg7: memref<4x1xf32, #tpu.memory_space<vmem>>, %arg8: memref<1x4x16x16xf32, #tpu.memory_space<vmem>>) attributes {dimension_semantics = [#tpu.dimension_semantics<parallel>], iteration_bounds = array<i64: 2>, scalar_prefetch = 0 : i64, scratch_operands = 0 : i64, tpu.core_type = #tpu.core_type<tc>, window_params = [{transform_indices = @transform_0, window_bounds = array<i64: 1, 4, 16, 16>}, {pipeline_mode = #tpu.pipeline_mode<synchronous>, transform_indices = @transform_1, window_bounds = array<i64: 8, 4>}, {pipeline_mode = #tpu.pipeline_mode<synchronous>, transform_indices = @transform_2, window_bounds = array<i64: 8, 1>}, {pipeline_mode = #tpu.pipeline_mode<synchronous>, transform_indices = @transform_3, window_bounds = array<i64: 4, 8>}, {pipeline_mode = #tpu.pipeline_mode<synchronous>, transform_indices = @transform_4, window_bounds = array<i64: 4, 1>}, {pipeline_mode = #tpu.pipeline_mode<synchronous>, transform_indices = @transform_5, window_bounds = array<i64: 4, 8>}, {pipeline_mode = #tpu.pipeline_mode<synchronous>, transform_indices = @transform_6, window_bounds = array<i64: 4, 1>}, {transform_indices = @transform_7, window_bounds = array<i64: 1, 4, 16, 16>}]} {
    %c0 = arith.constant 0 : index
    %c0_0 = arith.constant 0 : index
    %c0_1 = arith.constant 0 : index
    %c0_2 = arith.constant 0 : index
    %0 = vector.load %arg1[%c0, %c0_0, %c0_1, %c0_2] : memref<1x4x16x16xf32, #tpu.memory_space<vmem>>, vector<1x4x16x16xf32>
    %1 = vector.shape_cast %0 : vector<1x4x16x16xf32> to vector<4x16x16xf32>
    %cst = arith.constant dense<0.000000e+00> : vector<4x16xf32>
    %2 = vector.multi_reduction <add>, %1, %cst [2] : vector<4x16x16xf32> to vector<4x16xf32>
    %cst_3 = arith.constant 1.600000e+01 : f32
    %3 = vector.broadcast %cst_3 : f32 to vector<4x16xf32>
    %4 = arith.divf %2, %3 : vector<4x16xf32>
    %cst_4 = arith.constant dense<0.000000e+00> : vector<4x16xf32>
    %5 = vector.multi_reduction <add>, %1, %cst_4 [1] : vector<4x16x16xf32> to vector<4x16xf32>
    %cst_5 = arith.constant 1.600000e+01 : f32
    %6 = vector.broadcast %cst_5 : f32 to vector<4x16xf32>
    %7 = arith.divf %5, %6 : vector<4x16xf32>
    %c0_6 = arith.constant 0 : index
    %c0_7 = arith.constant 0 : index
    %8 = vector.load %arg2[%c0_6, %c0_7] : memref<8x4xf32, #tpu.memory_space<vmem>>, vector<8x4xf32>
    %c0_8 = arith.constant 0 : index
    %c0_9 = arith.constant 0 : index
    %9 = vector.load %arg3[%c0_8, %c0_9] : memref<8x1xf32, #tpu.memory_space<vmem>>, vector<8x1xf32>
    %cst_10 = arith.constant dense<0.000000e+00> : vector<8x16xf32>
    %10 = tpu.matmul %8, %4, %cst_10 {dimension_numbers = #tpu.dot_dimension_numbers<[1], [0], [0], [1], [0, 0, 1, 1], [], []>} : vector<8x4xf32>, vector<4x16xf32>, vector<8x16xf32> -> vector<8x16xf32>
    %11 = vector.broadcast %9 : vector<8x1xf32> to vector<8x16xf32>
    %12 = arith.addf %10, %11 : vector<8x16xf32>
    %cst_11 = arith.constant 3.000000e+00 : f32
    %13 = vector.broadcast %cst_11 : f32 to vector<8x16xf32>
    %14 = arith.addf %12, %13 : vector<8x16xf32>
    %cst_12 = arith.constant 0.000000e+00 : f32
    %cst_13 = arith.constant 6.000000e+00 : f32
    %15 = vector.broadcast %cst_12 : f32 to vector<8x16xf32>
    %16 = arith.maximumf %15, %14 : vector<8x16xf32>
    %17 = vector.broadcast %cst_13 : f32 to vector<8x16xf32>
    %18 = arith.minimumf %17, %16 : vector<8x16xf32>
    %19 = arith.mulf %12, %18 : vector<8x16xf32>
    %cst_14 = arith.constant 0.166666672 : f32
    %20 = vector.broadcast %cst_14 : f32 to vector<8x16xf32>
    %21 = arith.mulf %19, %20 : vector<8x16xf32>
    %cst_15 = arith.constant dense<0.000000e+00> : vector<8x16xf32>
    %22 = tpu.matmul %8, %7, %cst_15 {dimension_numbers = #tpu.dot_dimension_numbers<[1], [0], [0], [1], [0, 0, 1, 1], [], []>} : vector<8x4xf32>, vector<4x16xf32>, vector<8x16xf32> -> vector<8x16xf32>
    %23 = vector.broadcast %9 : vector<8x1xf32> to vector<8x16xf32>
    %24 = arith.addf %22, %23 : vector<8x16xf32>
    %cst_16 = arith.constant 3.000000e+00 : f32
    %25 = vector.broadcast %cst_16 : f32 to vector<8x16xf32>
    %26 = arith.addf %24, %25 : vector<8x16xf32>
    %cst_17 = arith.constant 0.000000e+00 : f32
    %cst_18 = arith.constant 6.000000e+00 : f32
    %27 = vector.broadcast %cst_17 : f32 to vector<8x16xf32>
    %28 = arith.maximumf %27, %26 : vector<8x16xf32>
    %29 = vector.broadcast %cst_18 : f32 to vector<8x16xf32>
    %30 = arith.minimumf %29, %28 : vector<8x16xf32>
    %31 = arith.mulf %24, %30 : vector<8x16xf32>
    %cst_19 = arith.constant 0.166666672 : f32
    %32 = vector.broadcast %cst_19 : f32 to vector<8x16xf32>
    %33 = arith.mulf %31, %32 : vector<8x16xf32>
    %c0_20 = arith.constant 0 : index
    %c0_21 = arith.constant 0 : index
    %34 = vector.load %arg4[%c0_20, %c0_21] : memref<4x8xf32, #tpu.memory_space<vmem>>, vector<4x8xf32>
    %cst_22 = arith.constant dense<0.000000e+00> : vector<4x16xf32>
    %35 = tpu.matmul %34, %21, %cst_22 {dimension_numbers = #tpu.dot_dimension_numbers<[1], [0], [0], [1], [0, 0, 1, 1], [], []>} : vector<4x8xf32>, vector<8x16xf32>, vector<4x16xf32> -> vector<4x16xf32>
    %c0_23 = arith.constant 0 : index
    %c0_24 = arith.constant 0 : index
    %36 = vector.load %arg5[%c0_23, %c0_24] : memref<4x1xf32, #tpu.memory_space<vmem>>, vector<4x1xf32>
    %37 = vector.broadcast %36 : vector<4x1xf32> to vector<4x16xf32>
    %38 = arith.addf %35, %37 : vector<4x16xf32>
    %39 = arith.negf %38 : vector<4x16xf32>
    %40 = math.exp %39 : vector<4x16xf32>
    %cst_25 = arith.constant 1.000000e+00 : f32
    %41 = vector.broadcast %cst_25 : f32 to vector<4x16xf32>
    %42 = arith.addf %41, %40 : vector<4x16xf32>
    %43 = arith.divf %41, %42 : vector<4x16xf32>
    %c0_26 = arith.constant 0 : index
    %c0_27 = arith.constant 0 : index
    %44 = vector.load %arg6[%c0_26, %c0_27] : memref<4x8xf32, #tpu.memory_space<vmem>>, vector<4x8xf32>
    %cst_28 = arith.constant dense<0.000000e+00> : vector<4x16xf32>
    %45 = tpu.matmul %44, %33, %cst_28 {dimension_numbers = #tpu.dot_dimension_numbers<[1], [0], [0], [1], [0, 0, 1, 1], [], []>} : vector<4x8xf32>, vector<8x16xf32>, vector<4x16xf32> -> vector<4x16xf32>
    %c0_29 = arith.constant 0 : index
    %c0_30 = arith.constant 0 : index
    %46 = vector.load %arg7[%c0_29, %c0_30] : memref<4x1xf32, #tpu.memory_space<vmem>>, vector<4x1xf32>
    %47 = vector.broadcast %46 : vector<4x1xf32> to vector<4x16xf32>
    %48 = arith.addf %45, %47 : vector<4x16xf32>
    %49 = arith.negf %48 : vector<4x16xf32>
    %50 = math.exp %49 : vector<4x16xf32>
    %cst_31 = arith.constant 1.000000e+00 : f32
    %51 = vector.broadcast %cst_31 : f32 to vector<4x16xf32>
    %52 = arith.addf %51, %50 : vector<4x16xf32>
    %53 = arith.divf %51, %52 : vector<4x16xf32>
    %54 = vector.shape_cast %43 : vector<4x16xf32> to vector<4x16x1xf32>
    %55 = vector.broadcast %54 : vector<4x16x1xf32> to vector<4x16x16xf32>
    %56 = arith.mulf %1, %55 : vector<4x16x16xf32>
    %57 = vector.shape_cast %53 : vector<4x16xf32> to vector<4x1x16xf32>
    %58 = vector.broadcast %57 : vector<4x1x16xf32> to vector<4x16x16xf32>
    %59 = arith.mulf %56, %58 : vector<4x16x16xf32>
    %c0_32 = arith.constant 0 : index
    %c0_33 = arith.constant 0 : index
    %c0_34 = arith.constant 0 : index
    %c0_35 = arith.constant 0 : index
    %60 = vector.load %arg8[%c0_32, %c0_33, %c0_34, %c0_35] : memref<1x4x16x16xf32, #tpu.memory_space<vmem>>, vector<1x4x16x16xf32>
    %61 = vector.shape_cast %60 : vector<1x4x16x16xf32> to vector<4x16x16xf32>
    %62 = vector.shape_cast %59 : vector<4x16x16xf32> to vector<1x4x16x16xf32>
    tpu.vector_store %arg8[%c0_32, %c0_33, %c0_34, %c0_35], %62 {strides = array<i32>} : memref<1x4x16x16xf32, #tpu.memory_space<vmem>>, vector<1x4x16x16xf32>,
    return
  }
  func.func @transform_0(%arg0: i32) -> (i32, i32, i32, i32) {
    %c0_i32 = arith.constant 0 : i32
    %c0_i32_0 = arith.constant 0 : i32
    %c0_i32_1 = arith.constant 0 : i32
    %c0_i32_2 = arith.constant 0 : i32
    return %arg0, %c0_i32, %c0_i32_0, %c0_i32_1 : i32, i32, i32, i32
  }
  func.func @transform_1(%arg0: i32) -> (i32, i32) {
    %c0_i32 = arith.constant 0 : i32
    %c0_i32_0 = arith.constant 0 : i32
    %c0_i32_1 = arith.constant 0 : i32
    return %c0_i32, %c0_i32_0 : i32, i32
  }
  func.func @transform_2(%arg0: i32) -> (i32, i32) {
    %c0_i32 = arith.constant 0 : i32
    %c0_i32_0 = arith.constant 0 : i32
    %c0_i32_1 = arith.constant 0 : i32
    return %c0_i32, %c0_i32_0 : i32, i32
  }
  func.func @transform_3(%arg0: i32) -> (i32, i32) {
    %c0_i32 = arith.constant 0 : i32
    %c0_i32_0 = arith.constant 0 : i32
    %c0_i32_1 = arith.constant 0 : i32
    return %c0_i32, %c0_i32_0 : i32, i32
  }
  func.func @transform_4(%arg0: i32) -> (i32, i32) {
    %c0_i32 = arith.constant 0 : i32
    %c0_i32_0 = arith.constant 0 : i32
    %c0_i32_1 = arith.constant 0 : i32
    return %c0_i32, %c0_i32_0 : i32, i32
  }
  func.func @transform_5(%arg0: i32) -> (i32, i32) {
    %c0_i32 = arith.constant 0 : i32
    %c0_i32_0 = arith.constant 0 : i32
    %c0_i32_1 = arith.constant 0 : i32
    return %c0_i32, %c0_i32_0 : i32, i32
  }
  func.func @transform_6(%arg0: i32) -> (i32, i32) {
    %c0_i32 = arith.constant 0 : i32
    %c0_i32_0 = arith.constant 0 : i32
    %c0_i32_1 = arith.constant 0 : i32
    return %c0_i32, %c0_i32_0 : i32, i32
  }
  func.func @transform_7(%arg0: i32) -> (i32, i32, i32, i32) {
    %c0_i32 = arith.constant 0 : i32
    %c0_i32_0 = arith.constant 0 : i32
    %c0_i32_1 = arith.constant 0 : i32
    %c0_i32_2 = arith.constant 0 : i32
    return %arg0, %c0_i32, %c0_i32_0, %c0_i32_1 : i32, i32, i32, i32
  }
}

</mosaic_0001>

<llo_original>
// kernel: tpu_custom_call.1
$region0: #{tpu_custom_call.1}
  #allocation0 [shape = 'u32[]', space=smem, size = 0x4, offset = 0x4, fixed_abs, tag = 'smem constant byte address 0x4 - core index']
  #allocation1 [shape = 'u32[72,128]{1,0:T(1,128)}', space=vmem, size = 0x9000, scoped, tag = 'internal scratch']
  %s0 = inlined_call_operand.hbm [shape: f32[2,4,16,16], index: 0, kind: input, shape index: {}]
  %s1 = inlined_call_operand.vmem [shape: f32[8,4], index: 1, kind: input, shape index: {}]
  %s2 = inlined_call_operand.vmem [shape: f32[8,1], index: 2, kind: input, shape index: {}]
  %s3 = inlined_call_operand.vmem [shape: f32[4,8], index: 3, kind: input, shape index: {}]
  %s4 = inlined_call_operand.vmem [shape: f32[4,1], index: 4, kind: input, shape index: {}]
  %s5 = inlined_call_operand.vmem [shape: f32[4,8], index: 5, kind: input, shape index: {}]
  %s6 = inlined_call_operand.vmem [shape: f32[4,1], index: 6, kind: input, shape index: {}]
  %s7 = inlined_call_operand.hbm [shape: f32[2,4,16,16], index: 7, kind: output, shape index: {}]
  %s8 = sld [smem:[#allocation0]]
  $region65: #{tpu_custom_call.1} parent=0
    _
  %s10 = ssub.s32 1, %s8
  %s11 = scalar_select 0, %s10, %s8
  $region1: #{tpu_custom_call.1} parent=0
    #allocation2 [shape = 'u8[65536]{0}', space=vmem, size = 0x10000, scoped, tag = 'input window, operand 0']
    #allocation3 [shape = 's32[2]{0}', space=sflag, size = 0x8, scoped, tag = 'scoped memory for tpu_custom_call.1']
    #allocation4 [shape = 's32[2]{0}', space=sflag, size = 0x8, scoped, tag = 'scoped memory for tpu_custom_call.1']
    #allocation5 [shape = 'u8[65536]{0}', space=vmem, size = 0x10000, scoped, tag = 'output window, operand 0']
    %12 = vsyncpa [#allocation3], 0
    %s13 = scalar_lea.sflag [#allocation3], 1
    %14 = vsyncpa %s13, 0
    %15 = vsyncpa [#allocation4], 0
    %s16 = scalar_lea.sflag [#allocation4], 1
    %17 = vsyncpa %s16, 0
    loop: start=0, step=1, limit=4
    $region2: #{tpu_custom_call.1} parent=1 // loop_pre_header
      _
    $region3: #{tpu_custom_call.1} parent=1 // loop_header
      %s19 = sphi 0, %s23
      %p20 = scmp.ge.s32.totalorder %s19, 4
      %s29 = sphi 0, %s31
      %s32 = sphi 0, %s29
      %s33 = sphi 0, %s32
      %s49 = sphi 0, %s33
      %s53 = sphi 0, %s53
      %s55 = sphi 0, %s53
      %s56 = sphi 0, %s55
      %s70 = sphi 0, %s56
      %s74 = sphi 0, %s74
      %s76 = sphi 0, %s74
      %s77 = sphi 0, %s76
      %s91 = sphi 0, %s77
      %s95 = sphi 0, %s95
      %s97 = sphi 0, %s95
      %s98 = sphi 0, %s97
      %s112 = sphi 0, %s98
      %s116 = sphi 0, %s116
      %s118 = sphi 0, %s116
      %s119 = sphi 0, %s118
      %s133 = sphi 0, %s119
      %s137 = sphi 0, %s137
      %s139 = sphi 0, %s137
      %s140 = sphi 0, %s139
      %s154 = sphi 0, %s140
      %s158 = sphi 0, %s158
      %s160 = sphi 0, %s158
      %s161 = sphi 0, %s160
      %s175 = sphi 0, %s161
      %s181 = sphi 0, %s183
      %s184 = sphi 0, %s181
      %s185 = sphi 0, %s184
      %s201 = sphi 0, %s185
    $region4: #{tpu_custom_call.1} parent=1 // loop_header_branch
      %22 = sbr.rel (%p20) target = $region8
    $region5: #{tpu_custom_call.1} parent=1 // loop_body
      %s24 = ssub.s32 %s19, 1
      %s25 = ssub.s32 %s19, 2
      %s26 = sadd.s32 %s19, 1
      %s27 = ssub.s32 %s19, %s26
      %p28 = scmp.eq.s32.totalorder %s27, 0
      %s30 = sadd.s32 %s29, 1
      %s31 = scalar_select %p28, %s29, %s30
      %p34 = pneg %p28
      %p35 = scmp.eq.s32.totalorder %s19, 1
      %p36 = por %p34, %p35
      %p37 = scmp.ne.s32.totalorder %s29, %s32
      %p38 = scmp.eq.s32.totalorder %s19, 0
      %p39 = por %p37, %p38
      %p40 = scmp.ne.s32.totalorder %s29, %s32
      %p41 = scmp.eq.s32.totalorder %s24, 1
      %p42 = por %p40, %p41
      %p43 = scmp.ne.s32.totalorder %s32, %s33
      %p44 = scmp.eq.s32.totalorder %s24, 0
      %p45 = por %p43, %p44
      %p46 = scmp.ne.s32.totalorder %s32, %s33
      %p47 = scmp.eq.s32.totalorder %s25, 1
      %p48 = por %p46, %p47
      %p50 = scmp.ne.s32.totalorder %s33, %s49
      %p51 = scmp.eq.s32.totalorder %s25, 0
      %p52 = por %p50, %p51
      %s54 = sadd.s32 %s53, 1
      %p57 = scmp.eq.s32.totalorder %s19, 1
      %p58 = scmp.ne.s32.totalorder %s53, %s55
      %p59 = scmp.eq.s32.totalorder %s19, 0
      %p60 = por %p58, %p59
      %p61 = scmp.ne.s32.totalorder %s53, %s55
      %p62 = scmp.eq.s32.totalorder %s24, 1
      %p63 = por %p61, %p62
      %p64 = scmp.ne.s32.totalorder %s55, %s56
      %p65 = scmp.eq.s32.totalorder %s24, 0
      %p66 = por %p64, %p65
      %p67 = scmp.ne.s32.totalorder %s55, %s56
      %p68 = scmp.eq.s32.totalorder %s25, 1
      %p69 = por %p67, %p68
      %p71 = scmp.ne.s32.totalorder %s56, %s70
      %p72 = scmp.eq.s32.totalorder %s25, 0
      %p73 = por %p71, %p72
      %s75 = sadd.s32 %s74, 1
      %p78 = scmp.eq.s32.totalorder %s19, 1
      %p79 = scmp.ne.s32.totalorder %s74, %s76
      %p80 = scmp.eq.s32.totalorder %s19, 0
      %p81 = por %p79, %p80
      %p82 = scmp.ne.s32.totalorder %s74, %s76
      %p83 = scmp.eq.s32.totalorder %s24, 1
      %p84 = por %p82, %p83
      %p85 = scmp.ne.s32.totalorder %s76, %s77
      %p86 = scmp.eq.s32.totalorder %s24, 0
      %p87 = por %p85, %p86
      %p88 = scmp.ne.s32.totalorder %s76, %s77
      %p89 = scmp.eq.s32.totalorder %s25, 1
      %p90 = por %p88, %p89
      %p92 = scmp.ne.s32.totalorder %s77, %s91
      %p93 = scmp.eq.s32.totalorder %s25, 0
      %p94 = por %p92, %p93
      %s96 = sadd.s32 %s95, 1
      %p99 = scmp.eq.s32.totalorder %s19, 1
      %p100 = scmp.ne.s32.totalorder %s95, %s97
      %p101 = scmp.eq.s32.totalorder %s19, 0
      %p102 = por %p100, %p101
      %p103 = scmp.ne.s32.totalorder %s95, %s97
      %p104 = scmp.eq.s32.totalorder %s24, 1
      %p105 = por %p103, %p104
      %p106 = scmp.ne.s32.totalorder %s97, %s98
      %p107 = scmp.eq.s32.totalorder %s24, 0
      %p108 = por %p106, %p107
      %p109 = scmp.ne.s32.totalorder %s97, %s98
      %p110 = scmp.eq.s32.totalorder %s25, 1
      %p111 = por %p109, %p110
      %p113 = scmp.ne.s32.totalorder %s98, %s112
      %p114 = scmp.eq.s32.totalorder %s25, 0
      %p115 = por %p113, %p114
      %s117 = sadd.s32 %s116, 1
      %p120 = scmp.eq.s32.totalorder %s19, 1
      %p121 = scmp.ne.s32.totalorder %s116, %s118
      %p122 = scmp.eq.s32.totalorder %s19, 0
      %p123 = por %p121, %p122
      %p124 = scmp.ne.s32.totalorder %s116, %s118
      %p125 = scmp.eq.s32.totalorder %s24, 1
      %p126 = por %p124, %p125
      %p127 = scmp.ne.s32.totalorder %s118, %s119
      %p128 = scmp.eq.s32.totalorder %s24, 0
      %p129 = por %p127, %p128
      %p130 = scmp.ne.s32.totalorder %s118, %s119
      %p131 = scmp.eq.s32.totalorder %s25, 1
      %p132 = por %p130, %p131
      %p134 = scmp.ne.s32.totalorder %s119, %s133
      %p135 = scmp.eq.s32.totalorder %s25, 0
      %p136 = por %p134, %p135
      %s138 = sadd.s32 %s137, 1
      %p141 = scmp.eq.s32.totalorder %s19, 1
      %p142 = scmp.ne.s32.totalorder %s137, %s139
      %p143 = scmp.eq.s32.totalorder %s19, 0
      %p144 = por %p142, %p143
      %p145 = scmp.ne.s32.totalorder %s137, %s139
      %p146 = scmp.eq.s32.totalorder %s24, 1
      %p147 = por %p145, %p146
      %p148 = scmp.ne.s32.totalorder %s139, %s140
      %p149 = scmp.eq.s32.totalorder %s24, 0
      %p150 = por %p148, %p149
      %p151 = scmp.ne.s32.totalorder %s139, %s140
      %p152 = scmp.eq.s32.totalorder %s25, 1
      %p153 = por %p151, %p152
      %p155 = scmp.ne.s32.totalorder %s140, %s154
      %p156 = scmp.eq.s32.totalorder %s25, 0
      %p157 = por %p155, %p156
      %s159 = sadd.s32 %s158, 1
      %p162 = scmp.eq.s32.totalorder %s19, 1
      %p163 = scmp.ne.s32.totalorder %s158, %s160
      %p164 = scmp.eq.s32.totalorder %s19, 0
      %p165 = por %p163, %p164
      %p166 = scmp.ne.s32.totalorder %s158, %s160
      %p167 = scmp.eq.s32.totalorder %s24, 1
      %p168 = por %p166, %p167
      %p169 = scmp.ne.s32.totalorder %s160, %s161
      %p170 = scmp.eq.s32.totalorder %s24, 0
      %p171 = por %p169, %p170
      %p172 = scmp.ne.s32.totalorder %s160, %s161
      %p173 = scmp.eq.s32.totalorder %s25, 1
      %p174 = por %p172, %p173
      %p176 = scmp.ne.s32.totalorder %s161, %s175
      %p177 = scmp.eq.s32.totalorder %s25, 0
      %p178 = por %p176, %p177
      %s179 = ssub.s32 %s19, %s26
      %p180 = scmp.eq.s32.totalorder %s179, 0
      %s182 = sadd.s32 %s181, 1
      %s183 = scalar_select %p180, %s181, %s182
      %p186 = pneg %p180
      %p187 = scmp.eq.s32.totalorder %s19, 1
      %p188 = por %p186, %p187
      %p189 = scmp.ne.s32.totalorder %s181, %s184
      %p190 = scmp.eq.s32.totalorder %s19, 0
      %p191 = por %p189, %p190
      %p192 = scmp.ne.s32.totalorder %s181, %s184
      %p193 = scmp.eq.s32.totalorder %s24, 1
      %p194 = por %p192, %p193
      %p195 = scmp.ne.s32.totalorder %s184, %s185
      %p196 = scmp.eq.s32.totalorder %s24, 0
      %p197 = por %p195, %p196
      %p198 = scmp.ne.s32.totalorder %s184, %s185
      %p199 = scmp.eq.s32.totalorder %s25, 1
      %p200 = por %p198, %p199
      %p202 = scmp.ne.s32.totalorder %s185, %s201
      %p203 = scmp.eq.s32.totalorder %s25, 0
      %p204 = por %p202, %p203
      %p205 = scmp.le.s32.totalorder 1, %s19
      %p206 = scmp.lt.s32.totalorder %s19, 3
      %p207 = pnand %p205, %p206
      %p208 = pneg %p207
      // Predicated region
      $region9: #{tpu_custom_call.1} parent=5 // pred_check
        _
      $region10: #{tpu_custom_call.1} parent=5 // pred_check_branch
        %210 = sbr.rel (%p207) target = $region12
      $region11: #{tpu_custom_call.1} parent=5 // pred_region
        %s211 = ssub.s32 %s19, 1
        // Predicated region
        $region13: #{tpu_custom_call.1} parent=11 // pred_check
          %p212 = pneg %p66
        $region14: #{tpu_custom_call.1} parent=11 // pred_check_branch
          %214 = sbr.rel (%p212) target = $region16
        $region15: #{tpu_custom_call.1} parent=11 // pred_region
          _
        $region16: #{tpu_custom_call.1} parent=11 // pred_fallthru
          _
        // Predicated region
        $region17: #{tpu_custom_call.1} parent=11 // pred_check
          %p215 = pneg %p87
        $region18: #{tpu_custom_call.1} parent=11 // pred_check_branch
          %217 = sbr.rel (%p215) target = $region20
        $region19: #{tpu_custom_call.1} parent=11 // pred_region
          _
        $region20: #{tpu_custom_call.1} parent=11 // pred_fallthru
          _
        // Predicated region
        $region21: #{tpu_custom_call.1} parent=11 // pred_check
          %p218 = pneg %p108
        $region22: #{tpu_custom_call.1} parent=11 // pred_check_branch
          %220 = sbr.rel (%p218) target = $region24
        $region23: #{tpu_custom_call.1} parent=11 // pred_region
          _
        $region24: #{tpu_custom_call.1} parent=11 // pred_fallthru
          _
        // Predicated region
        $region25: #{tpu_custom_call.1} parent=11 // pred_check
          %p221 = pneg %p129
        $region26: #{tpu_custom_call.1} parent=11 // pred_check_branch
          %223 = sbr.rel (%p221) target = $region28
        $region27: #{tpu_custom_call.1} parent=11 // pred_region
          _
        $region28: #{tpu_custom_call.1} parent=11 // pred_fallthru
          _
        // Predicated region
        $region29: #{tpu_custom_call.1} parent=11 // pred_check
          %p224 = pneg %p150
        $region30: #{tpu_custom_call.1} parent=11 // pred_check_branch
          %226 = sbr.rel (%p224) target = $region32
        $region31: #{tpu_custom_call.1} parent=11 // pred_region
          _
        $region32: #{tpu_custom_call.1} parent=11 // pred_fallthru
          _
        // Predicated region
        $region33: #{tpu_custom_call.1} parent=11 // pred_check
          %p227 = pneg %p171
        $region34: #{tpu_custom_call.1} parent=11 // pred_check_branch
          %229 = sbr.rel (%p227) target = $region36
        $region35: #{tpu_custom_call.1} parent=11 // pred_region
          _
        $region36: #{tpu_custom_call.1} parent=11 // pred_fallthru
          _
      $region12: #{tpu_custom_call.1} parent=5 // pred_fallthru
        _
      %p230 = scmp.lt.s32.totalorder %s19, 2
      // Predicated region
      $region37: #{tpu_custom_call.1} parent=5 // pred_check
        %p231 = pneg %p230
      $region38: #{tpu_custom_call.1} parent=5 // pred_check_branch
        %233 = sbr.rel (%p231) target = $region40
      $region39: #{tpu_custom_call.1} parent=5 // pred_region
        // Predicated region
        $region41: #{tpu_custom_call.1} parent=39 // pred_check
          %p234 = pneg %p39
        $region42: #{tpu_custom_call.1} parent=39 // pred_check_branch
          %236 = sbr.rel (%p234) target = $region44
        $region43: #{tpu_custom_call.1} parent=39 // pred_region
          %s237 = sand.u32 %s29, 1
          %s238 = scalar_lea.sflag [#allocation3], %s237
          %s239 = sand.u32 %s29, 1
          %s240 = smul.addr %s239, 64
          %s241 = scalar_lea.vmem [#allocation2], %s240
          %243 = vsyncadd %s238, 0
          %s244 = smul.addr %s19, 8
          %s245 = smul.addr %s244, 8
          %s246 = scalar_lea.hbm %s0, %s245
          %s247 = sshll.u32 %s246, 4
          %s248 = int_to_ptr.hbm [resolvable:$true] %s247
          %s249 = sshll.u32 %s241, 4
          %s250 = int_to_ptr.vmem [resolvable:$true] %s249
          %255 = dma.hbm_to_vmem [thread:$0]  %s248, 1024, %s250, %s238, 128, 128, 8
        $region44: #{tpu_custom_call.1} parent=39 // pred_fallthru
          _
      $region40: #{tpu_custom_call.1} parent=5 // pred_fallthru
        _
      %p256 = scmp.le.s32.totalorder 1, %s19
      %p257 = scmp.lt.s32.totalorder %s19, 3
      %p258 = pnand %p256, %p257
      %p259 = pneg %p258
      // Predicated region
      $region45: #{tpu_custom_call.1} parent=5 // pred_check
        _
      $region46: #{tpu_custom_call.1} parent=5 // pred_check_branch
        %261 = sbr.rel (%p258) target = $region48
      $region47: #{tpu_custom_call.1} parent=5 // pred_region
        %s262 = ssub.s32 %s19, 1
        %s263 = sand.u32 %s32, 1
        %s264 = scalar_lea.sflag [#allocation3], %s263
        %s265 = sand.u32 %s32, 1
        %s266 = smul.addr %s265, 64
        %s267 = scalar_lea.vmem [#allocation2], %s266
        // Predicated region
        $region49: #{tpu_custom_call.1} parent=47 // pred_check
          %p268 = pneg %p45
        $region50: #{tpu_custom_call.1} parent=47 // pred_check_branch
          %270 = sbr.rel (%p268) target = $region52
        $region51: #{tpu_custom_call.1} parent=47 // pred_region
          %272 = dma.done %s264, 1024
        $region52: #{tpu_custom_call.1} parent=47 // pred_fallthru
          _
        %s273 = sand.u32 %s32, 1
        %s274 = scalar_lea.sflag [#allocation3], %s273
        %s275 = sand.u32 %s32, 1
        %s276 = smul.addr %s275, 64
        %s277 = scalar_lea.vmem [#allocation2], %s276
        %p278 = pneg %p45
        %p279 = pneg %p42
        %p280 = pneg %p66
        %p281 = pneg %p63
        %p282 = pneg %p87
        %p283 = pneg %p84
        %p284 = pneg %p108
        %p285 = pneg %p105
        %p286 = pneg %p129
        %p287 = pneg %p126
        %p288 = pneg %p150
        %p289 = pneg %p147
        %p290 = pneg %p171
        %p291 = pneg %p168
        %p292 = pneg %p197
        %p293 = pneg %p194
        %s294 = sand.u32 %s184, 1
        %s295 = scalar_lea.sflag [#allocation4], %s294
        %s296 = sand.u32 %s184, 1
        %s297 = smul.addr %s296, 64
        %s298 = scalar_lea.vmem [#allocation5], %s297
        %v299 = vld [vmem:[%s267] sm:$0xff]
        %v300 = vld [vmem:[%s267 + $0x8] sm:$0xff]
        %v301 = vld [vmem:[%s267 + $0x10] sm:$0xff]
        %v302 = vld [vmem:[%s267 + $0x18] sm:$0xff]
        %v303 = vld [vmem:[%s267 + $0x20] sm:$0xff]
        %v304 = vld [vmem:[%s267 + $0x28] sm:$0xff]
        %v305 = vld [vmem:[%s267 + $0x30] sm:$0xff]
        %v306 = vld [vmem:[%s267 + $0x38] sm:$0xff]
        %vm307 = vcmask 130048
        %v308 = vsel %vm307, %v299, 0.0
        %309 = vadd.xlane.f32.xlu0 %v308
        %v310 = vpop.xlane.xlu0 %309
        %v311 = vsel %vm307, %v300, 0.0
        %312 = vadd.xlane.f32.xlu0 %v311
        %v313 = vpop.xlane.xlu0 %312
        %v314 = vsel %vm307, %v301, 0.0
        %315 = vadd.xlane.f32.xlu0 %v314
        %v316 = vpop.xlane.xlu0 %315
        %v317 = vsel %vm307, %v302, 0.0
        %318 = vadd.xlane.f32.xlu0 %v317
        %v319 = vpop.xlane.xlu0 %318
        %v320 = vsel %vm307, %v303, 0.0
        %321 = vadd.xlane.f32.xlu0 %v320
        %v322 = vpop.xlane.xlu0 %321
        %v323 = vsel %vm307, %v304, 0.0
        %324 = vadd.xlane.f32.xlu0 %v323
        %v325 = vpop.xlane.xlu0 %324
        %v326 = vsel %vm307, %v305, 0.0
        %327 = vadd.xlane.f32.xlu0 %v326
        %v328 = vpop.xlane.xlu0 %327
        %v329 = vsel %vm307, %v306, 0.0
        %330 = vadd.xlane.f32.xlu0 %v329
        %v331 = vpop.xlane.xlu0 %330
        %v332 = vrcp.pop 16.0
        %v333 = vmul.f32 16.0, %v332
        %v334 = vsub.f32 1.0, %v333
        %v335 = vmul.f32 %v332, %v334
        %v336 = vadd.f32 %v332, %v335
        %vm337 = vweird.f32 %v332
        %v338 = vsel %vm337, %v332, %v336
        %v339 = vmul.f32 %v310, %v338
        %v340 = vmul.f32 %v313, %v338
        %v341 = vmul.f32 %v316, %v338
        %v342 = vmul.f32 %v319, %v338
        %v343 = vmul.f32 %v322, %v338
        %v344 = vmul.f32 %v325, %v338
        %v345 = vmul.f32 %v328, %v338
        %v346 = vmul.f32 %v331, %v338
        %v347 = vadd.f32 %v308, %v311
        %v348 = vrot.slane %v347, 4
        %v349 = vadd.f32 %v347, %v348
        %v350 = vrot.slane %v349, 2
        %v351 = vadd.f32 %v349, %v350
        %v352 = vrot.slane %v351, 1
        %v353 = vadd.f32 %v351, %v352
        %v354 = vadd.f32 %v314, %v317
        %v355 = vrot.slane %v354, 4
        %v356 = vadd.f32 %v354, %v355
        %v357 = vrot.slane %v356, 2
        %v358 = vadd.f32 %v356, %v357
        %v359 = vrot.slane %v358, 1
        %v360 = vadd.f32 %v358, %v359
        %v361 = vadd.f32 %v320, %v323
        %v362 = vrot.slane %v361, 4
        %v363 = vadd.f32 %v361, %v362
        %v364 = vrot.slane %v363, 2
        %v365 = vadd.f32 %v363, %v364
        %v366 = vrot.slane %v365, 1
        %v367 = vadd.f32 %v365, %v366
        %v368 = vadd.f32 %v326, %v329
        %v369 = vrot.slane %v368, 4
        %v370 = vadd.f32 %v368, %v369
        %v371 = vrot.slane %v370, 2
        %v372 = vadd.f32 %v370, %v371
        %v373 = vrot.slane %v372, 1
        %v374 = vadd.f32 %v372, %v373
        %v375 = vmul.f32 %v353, %v338
        %v376 = vmul.f32 %v360, %v338
        %v377 = vmul.f32 %v367, %v338
        %v378 = vmul.f32 %v374, %v338
        %v379 = vld [vmem:[%s1] sm:$0xff]
        %v380 = vld [vmem:[%s2] sm:$0xff]
        %382 = vset.pattern.permute.xlu0 0
        %383 = vperm.xlu0 %382, %v380
        %v384 = vpop.permute.xlu0 %383
        %v394 = vlaneseq
        %v395 = vand.u32 %v394, 127
        %v396 = vperm.slane %v339, %v395
        %v397 = vadd.s32 %v395, 4294967288
        %v398 = vperm.slane %v340, %v397
        %vm399 = vcmask 130112
        %v400 = vsel %vm399, %v398, %v396
        %v401 = vperm.slane %v341, %v395
        %v402 = vperm.slane %v342, %v397
        %v403 = vsel %vm399, %v402, %v401
        %v404 = vperm.slane %v343, %v395
        %v405 = vperm.slane %v344, %v397
        %v406 = vsel %vm399, %v405, %v404
        %v407 = vperm.slane %v345, %v395
        %v408 = vperm.slane %v346, %v397
        %v409 = vsel %vm399, %v408, %v407
        %vm410 = vcmask 1041409
        %v411 = vsel %vm410, %v403, %v400
        %vm412 = vcmask 1042434
        %v413 = vsel %vm412, %v406, %v411
        %vm414 = vcmask 1043459
        %v415 = vsel %vm414, %v409, %v413
        %vm416 = vcmask 31744
        %v418 = vsel %vm416, %v379, 0
        %vm420 = vcmask 1043456
        %v421 = vsel %vm420, %v415, 0
        %423 = vmatpush.msra.mxu0 0.0
        %424 = vmatpush.msra.mxu0 0.0
        %425 = vmatpush.msra.mxu0 0.0
        %426 = vmatpush.msra.mxu0 0.0
        %427 = vmatpush.msra.mxu0 0.0
        %428 = vmatpush.msra.mxu0 0.0
        %429 = vmatpush.msra.mxu0 0.0
        %430 = vmatpush.msra.mxu0 0.0
        %431 = vmatpush.msra.mxu0 0.0
        %432 = vmatpush.msra.mxu0 0.0
        %433 = vmatpush.msra.mxu0 0.0
        %434 = vmatpush.msra.mxu0 0.0
        %435 = vmatpush.msra.mxu0 0.0
        %436 = vmatpush.msra.mxu0 0.0
        %437 = vmatpush.msra.mxu0 0.0
        %438 = vmatpush.msra.mxu0 %v421
        %439 = vmatmul.f32.gmra.mxu0 %v418
        %v440 = vpop.f32.mrf.mxu0
        %v441 = vadd.f32 %v384, %v440
        %442 = vdwg.mxu0
        %v443 = vadd.f32 %v441, 3.0
        %v444 = vmax.f32 %v443, 0.0
        %v445 = vmin.f32 %v444, 6.0
        %v446 = vmul.f32 %v441, %v445
        %v447 = vmul.f32 %v446, 0.16666667
        %v452 = vsel %vm410, %v376, %v375
        %v453 = vsel %vm412, %v377, %v452
        %v454 = vsel %vm414, %v378, %v453
        %v455 = vsel %vm420, %v454, 0
        %457 = vmatpush.msra.mxu0 0.0
        %458 = vmatpush.msra.mxu0 0.0
        %459 = vmatpush.msra.mxu0 0.0
        %460 = vmatpush.msra.mxu0 0.0
        %461 = vmatpush.msra.mxu0 0.0
        %462 = vmatpush.msra.mxu0 0.0
        %463 = vmatpush.msra.mxu0 0.0
        %464 = vmatpush.msra.mxu0 0.0
        %465 = vmatpush.msra.mxu0 0.0
        %466 = vmatpush.msra.mxu0 0.0
        %467 = vmatpush.msra.mxu0 0.0
        %468 = vmatpush.msra.mxu0 0.0
        %469 = vmatpush.msra.mxu0 0.0
        %470 = vmatpush.msra.mxu0 0.0
        %471 = vmatpush.msra.mxu0 0.0
        %472 = vmatpush.msra.mxu0 %v455
        %473 = vmatmul.f32.gmra.mxu0 %v418
        %v474 = vpop.f32.mrf.mxu0
        %v475 = vadd.f32 %v384, %v474
        %476 = vdwg.mxu0
        %v477 = vadd.f32 %v475, 3.0
        %v478 = vmax.f32 %v477, 0.0
        %v479 = vmin.f32 %v478, 6.0
        %v480 = vmul.f32 %v475, %v479
        %v481 = vmul.f32 %v480, 0.16666667
        %v482 = vld [vmem:[%s3] sm:$0xf]
        %v483 = vld [vmem:[%s4] sm:$0xf]
        %485 = vset.pattern.permute.xlu0 0
        %486 = vperm.xlu0 %485, %v483
        %v487 = vpop.permute.xlu0 %486
        %vm489 = vcmask 64512
        %v491 = vsel %vm489, %v482, 0
        %493 = vmatpush.msra.mxu0 0.0
        %494 = vmatpush.msra.mxu0 0.0
        %495 = vmatpush.msra.mxu0 0.0
        %496 = vmatpush.msra.mxu0 0.0
        %497 = vmatpush.msra.mxu0 0.0
        %498 = vmatpush.msra.mxu0 0.0
        %499 = vmatpush.msra.mxu0 0.0
        %500 = vmatpush.msra.mxu0 0.0
        %501 = vmatpush.msra.mxu0 0.0
        %502 = vmatpush.msra.mxu0 0.0
        %503 = vmatpush.msra.mxu0 0.0
        %504 = vmatpush.msra.mxu0 0.0
        %505 = vmatpush.msra.mxu0 0.0
        %506 = vmatpush.msra.mxu0 0.0
        %507 = vmatpush.msra.mxu0 0.0
        %508 = vmatpush.msra.mxu0 %v447
        %509 = vmatmul.f32.gmra.mxu0 %v491
        %v510 = vpop.f32.mrf.mxu0
        %v511 = vadd.f32 %v487, %v510
        %512 = vdwg.mxu0
        %v513 = vxor.u32 %v511, 2147483648
        %v514 = vmul.f32 %v513, 1.442695
        %v515 = vpow.pop %v514
        %v516 = vadd.f32 %v515, 1.0
        %v517 = vrcp.pop %v516
        %v518 = vmul.f32 %v516, %v517
        %v519 = vsub.f32 1.0, %v518
        %v520 = vmul.f32 %v517, %v519
        %v521 = vadd.f32 %v517, %v520
        %vm522 = vweird.f32 %v516
        %vm523 = vweird.f32 %v517
        %vm524 = vmor %vm522, %vm523
        %v525 = vsel %vm524, %v517, %v521
        %v526 = vand.u32 2147483647, %v516
        %vm527 = vcmp.eq.f32.partialorder %v526, 8.507059e+37
        %v528 = vand.u32 %v516, 2147483648
        %v529 = vor.u32 1.1754944e-38, %v528
        %v530 = vsel %vm527, %v529, %v525
        %v531 = vmul.f32 1.0, %v530
        %v532 = vld [vmem:[%s5] sm:$0xf]
        %v533 = vld [vmem:[%s6] sm:$0xf]
        %535 = vset.pattern.permute.xlu0 0
        %536 = vperm.xlu0 %535, %v533
        %v537 = vpop.permute.xlu0 %536
        %v540 = vsel %vm489, %v532, 0
        %542 = vmatpush.msra.mxu0 0.0
        %543 = vmatpush.msra.mxu0 0.0
        %544 = vmatpush.msra.mxu0 0.0
        %545 = vmatpush.msra.mxu0 0.0
        %546 = vmatpush.msra.mxu0 0.0
        %547 = vmatpush.msra.mxu0 0.0
        %548 = vmatpush.msra.mxu0 0.0
        %549 = vmatpush.msra.mxu0 0.0
        %550 = vmatpush.msra.mxu0 0.0
        %551 = vmatpush.msra.mxu0 0.0
        %552 = vmatpush.msra.mxu0 0.0
        %553 = vmatpush.msra.mxu0 0.0
        %554 = vmatpush.msra.mxu0 0.0
        %555 = vmatpush.msra.mxu0 0.0
        %556 = vmatpush.msra.mxu0 0.0
        %557 = vmatpush.msra.mxu0 %v481
        %558 = vmatmul.f32.gmra.mxu0 %v540
        %v559 = vpop.f32.mrf.mxu0
        %v560 = vadd.f32 %v537, %v559
        %561 = vdwg.mxu0
        %v562 = vxor.u32 %v560, 2147483648
        %v563 = vmul.f32 %v562, 1.442695
        %v564 = vpow.pop %v563
        %v565 = vadd.f32 %v564, 1.0
        %v566 = vrcp.pop %v565
        %v567 = vmul.f32 %v565, %v566
        %v568 = vsub.f32 1.0, %v567
        %v569 = vmul.f32 %v566, %v568
        %v570 = vadd.f32 %v566, %v569
        %vm571 = vweird.f32 %v565
        %vm572 = vweird.f32 %v566
        %vm573 = vmor %vm571, %vm572
        %v574 = vsel %vm573, %v566, %v570
        %v575 = vand.u32 2147483647, %v565
        %vm576 = vcmp.eq.f32.partialorder %v575, 8.507059e+37
        %v577 = vand.u32 %v565, 2147483648
        %v578 = vor.u32 1.1754944e-38, %v577
        %v579 = vsel %vm576, %v578, %v574
        %v580 = vmul.f32 1.0, %v579
        %v581 = vperm.slane %v531, 0
        %v582 = vlaneseq
        %v583 = vshrl.u32 %v582, 7
        %585 = vset.pattern.permute.xlu0 %v583
        %586 = vperm.xlu0 %585, %v581
        %v587 = vpop.permute.xlu0 %586
        %v588 = vlaneseq
        %v589 = vshrl.u32 %v588, 7
        %v590 = vadd.s32 %v589, 8
        %591 = vset.pattern.permute.xlu0 %v590
        %592 = vperm.xlu0 %591, %v581
        %v593 = vpop.permute.xlu0 %592
        %v594 = vperm.slane %v531, 1
        %v595 = vlaneseq
        %v596 = vshrl.u32 %v595, 7
        %598 = vset.pattern.permute.xlu0 %v596
        %599 = vperm.xlu0 %598, %v594
        %v600 = vpop.permute.xlu0 %599
        %v601 = vlaneseq
        %v602 = vshrl.u32 %v601, 7
        %v603 = vadd.s32 %v602, 8
        %604 = vset.pattern.permute.xlu0 %v603
        %605 = vperm.xlu0 %604, %v594
        %v606 = vpop.permute.xlu0 %605
        %v607 = vperm.slane %v531, 2
        %v608 = vlaneseq
        %v609 = vshrl.u32 %v608, 7
        %611 = vset.pattern.permute.xlu0 %v609
        %612 = vperm.xlu0 %611, %v607
        %v613 = vpop.permute.xlu0 %612
        %v614 = vlaneseq
        %v615 = vshrl.u32 %v614, 7
        %v616 = vadd.s32 %v615, 8
        %617 = vset.pattern.permute.xlu0 %v616
        %618 = vperm.xlu0 %617, %v607
        %v619 = vpop.permute.xlu0 %618
        %v620 = vperm.slane %v531, 3
        %v621 = vlaneseq
        %v622 = vshrl.u32 %v621, 7
        %624 = vset.pattern.permute.xlu0 %v622
        %625 = vperm.xlu0 %624, %v620
        %v626 = vpop.permute.xlu0 %625
        %v627 = vlaneseq
        %v628 = vshrl.u32 %v627, 7
        %v629 = vadd.s32 %v628, 8
        %630 = vset.pattern.permute.xlu0 %v629
        %631 = vperm.xlu0 %630, %v620
        %v632 = vpop.permute.xlu0 %631
        %v633 = vmul.f32 %v299, %v587
        %v634 = vmul.f32 %v300, %v593
        %v635 = vmul.f32 %v301, %v600
        %v636 = vmul.f32 %v302, %v606
        %v637 = vmul.f32 %v303, %v613
        %v638 = vmul.f32 %v304, %v619
        %v639 = vmul.f32 %v305, %v626
        %v640 = vmul.f32 %v306, %v632
        %v642 = vrot.slane %v580, 1
        %v643 = vrot.slane %v580, 2
        %v644 = vrot.slane %v580, 3
        %v645 = vperm.slane %v580, 0
        %v646 = vperm.slane %v642, 0
        %v647 = vperm.slane %v643, 0
        %v648 = vperm.slane %v644, 0
        %v653 = vmul.f32 %v633, %v645
        %v654 = vmul.f32 %v634, %v645
        %v655 = vmul.f32 %v635, %v646
        %v656 = vmul.f32 %v636, %v646
        %v657 = vmul.f32 %v637, %v647
        %v658 = vmul.f32 %v638, %v647
        %v659 = vmul.f32 %v639, %v648
        %v660 = vmul.f32 %v640, %v648
        %661 = vst.msk [vmem:[%s298] sm:$0xff] %vm307, %v653
        %662 = vst.msk [vmem:[%s298 + $0x8] sm:$0xff] %vm307, %v654
        %663 = vst.msk [vmem:[%s298 + $0x10] sm:$0xff] %vm307, %v655
        %664 = vst.msk [vmem:[%s298 + $0x18] sm:$0xff] %vm307, %v656
        %665 = vst.msk [vmem:[%s298 + $0x20] sm:$0xff] %vm307, %v657
        %666 = vst.msk [vmem:[%s298 + $0x28] sm:$0xff] %vm307, %v658
        %667 = vst.msk [vmem:[%s298 + $0x30] sm:$0xff] %vm307, %v659
        %668 = vst.msk [vmem:[%s298 + $0x38] sm:$0xff] %vm307, %v660
        %s669 = sand.u32 %s184, 1
        %s670 = scalar_lea.sflag [#allocation4], %s669
        %s671 = sand.u32 %s184, 1
        %s672 = smul.addr %s671, 64
        %s673 = scalar_lea.vmem [#allocation5], %s672
        // Predicated region
        $region53: #{tpu_custom_call.1} parent=47 // pred_check
          %p674 = pneg %p194
        $region54: #{tpu_custom_call.1} parent=47 // pred_check_branch
          %676 = sbr.rel (%p674) target = $region56
        $region55: #{tpu_custom_call.1} parent=47 // pred_region
          %678 = vsyncadd %s670, 0
          %s679 = smul.addr %s24, 8
          %s680 = smul.addr %s679, 8
          %s681 = scalar_lea.hbm %s7, %s680
          %s682 = sshll.u32 %s673, 4
          %s683 = int_to_ptr.vmem [resolvable:$true] %s682
          %s684 = sshll.u32 %s681, 4
          %s685 = int_to_ptr.hbm [resolvable:$true] %s684
          %690 = dma.vmem_to_hbm [thread:$0]  %s683, 1024, %s685, %s670, 128, 128, 8
        $region56: #{tpu_custom_call.1} parent=47 // pred_fallthru
          _
      $region48: #{tpu_custom_call.1} parent=5 // pred_fallthru
        _
      %p691 = scmp.le.s32.totalorder 2, %s19
      // Predicated region
      $region57: #{tpu_custom_call.1} parent=5 // pred_check
        %p692 = pneg %p691
      $region58: #{tpu_custom_call.1} parent=5 // pred_check_branch
        %694 = sbr.rel (%p692) target = $region60
      $region59: #{tpu_custom_call.1} parent=5 // pred_region
        %s695 = ssub.s32 %s19, 2
        // Predicated region
        $region61: #{tpu_custom_call.1} parent=59 // pred_check
          %p696 = pneg %p200
        $region62: #{tpu_custom_call.1} parent=59 // pred_check_branch
          %698 = sbr.rel (%p696) target = $region64
        $region63: #{tpu_custom_call.1} parent=59 // pred_region
          %s699 = sand.u32 %s185, 1
          %s700 = scalar_lea.sflag [#allocation4], %s699
          %s701 = sand.u32 %s185, 1
          %s702 = smul.addr %s701, 64
          %s703 = scalar_lea.vmem [#allocation5], %s702
          %705 = dma.done %s700, 1024
        $region64: #{tpu_custom_call.1} parent=59 // pred_fallthru
          _
      $region60: #{tpu_custom_call.1} parent=5 // pred_fallthru
        _
    $region6: #{tpu_custom_call.1} parent=1 // loop_footer
      %s23 = sadd.s32 1, %s19
    $region7: #{tpu_custom_call.1} parent=1 // loop_footer_branch
      %18 = sbr.rel target = $region3
    $region8: #{tpu_custom_call.1} parent=1 // loop_exit
      _
    %706 = vsyncpa [#allocation3], 1
    %s707 = scalar_lea.sflag [#allocation3], 1
    %708 = vsyncpa %s707, 1
    %709 = vsyncpa [#allocation4], 1
    %s710 = scalar_lea.sflag [#allocation4], 1
    %711 = vsyncpa %s710, 1

</llo_original>
